<compile_context>
chip_gen: v7x
topology: tpu7x:2x2x1
jax: 0.10.0
libtpu: 0.0.40
codegen_flags: <defaults>
</compile_context>

<pallas_src>
import jax
import jax.numpy as jnp
from jax import lax
from jax.experimental import pallas as pl
from jax.experimental.pallas import tpu as pltpu


def _frozen_bn_kernel(x_ref, sb_ref, o_ref):
    # o = x * scale + shift ; sb is a (rows, 2) f32 slab: [:,0]=scale, [:,1]=shift.
    # Math in f32, store in the output dtype.
    x = x_ref[...].astype(jnp.float32)
    sb = sb_ref[...]
    o_ref[...] = (x * sb[:, 0:1] + sb[:, 1:2]).astype(o_ref.dtype)


def _round_up(x, m):
    return (x + m - 1) // m * m


def _chip_defaults():
    """(target_block_bytes, vmem_limit_bytes) tuned per TPU generation."""
    blk, lim = 4 << 20, 48 << 20          # safe everywhere: 4 x 4 MiB buffers
    try:
        vmem = int(pltpu.get_tpu_info().vmem_capacity_bytes)
    except Exception:
        vmem = None
    if vmem is not None and vmem == (64 << 20):
        # v7x: 64 MiB physical VMEM + 3.2 TB/s HBM -> 8 MiB blocks cut the
        # ~0.35us per-grid-step overhead to ~7%; 32 MiB of buffers < 48 MiB limit.
        blk = 8 << 20
    return blk, lim


def frozen_batch_norm_2d(x, weight, bias, running_mean, running_var,
                         *, eps=0.0, target_block_bytes=None):
    """x: (N, C, H, W). weight/bias/running_mean/running_var: (C,) buffers."""
    N, C, H, W = x.shape
    NC, HW = N * C, H * W
    itemsize = jnp.dtype(x.dtype).itemsize

    blk_default, vmem_limit = _chip_defaults()
    if target_block_bytes is None:
        target_block_bytes = blk_default

    # --- fold params on the (C,) vectors (negligible, done by XLA) ----------
    f32 = jnp.float32
    scale = weight.astype(f32) * lax.rsqrt(running_var.astype(f32) + eps)
    shift = bias.astype(f32) - running_mean.astype(f32) * scale
    # Packed (N*C, 2) per-row params; row order matches x.reshape(N*C, H*W).
    sb = jnp.tile(jnp.stack([scale, shift], axis=-1), (N, 1))

    # --- tile selection (no padding anywhere; ragged edges handled by Pallas)
    sub = max(8, 32 // itemsize)          # sublane granule: 8 f32 / 16 bf16 / 32 i8
    if HW * itemsize * sub <= target_block_bytes:
        block_cols = HW                   # full lane extent: bypasses the 128 rule
    else:
        block_cols = max(128, (target_block_bytes // (sub * itemsize)) // 128 * 128)
        block_cols = min(block_cols, _round_up(HW, 128))
    block_rows = max(sub, (target_block_bytes // (block_cols * itemsize)) // sub * sub)
    block_rows = min(block_rows, _round_up(NC, sub))

    grid = (pl.cdiv(NC, block_rows), pl.cdiv(HW, block_cols))

    x2d = x.reshape(NC, HW)               # free: merges contiguous dims

    x_spec = pl.BlockSpec((block_rows, block_cols), lambda i, j: (i, j))
    sb_spec = pl.BlockSpec((block_rows, 2), lambda i, j: (i, 0))

    out2d = pl.pallas_call(
        _frozen_bn_kernel,
        out_shape=jax.ShapeDtypeStruct((NC, HW), x.dtype),
        grid_spec=pltpu.PrefetchScalarGridSpec(
            num_scalar_prefetch=0,
            grid=grid,
            in_specs=[x_spec, sb_spec],
            out_specs=x_spec,
        ),
        compiler_params=pltpu.CompilerParams(
            dimension_semantics=("parallel", "parallel"),
            vmem_limit_bytes=vmem_limit),
        cost_estimate=pl.CostEstimate(
            flops=2 * NC * HW,
            transcendentals=0,
            bytes_accessed=2 * NC * HW * itemsize + sb.size * 4),
    )(x2d, sb)

    return out2d.reshape(N, C, H, W)


def _reference(x, weight, bias, running_mean, running_var):
    # Mirrors the PyTorch forward exactly (no eps).
    scale = weight * lax.rsqrt(running_var)
    b_adj = bias - running_mean * scale
    return x * scale.reshape(1, -1, 1, 1) + b_adj.reshape(1, -1, 1, 1)


if __name__ == "__main__":
    key = jax.random.PRNGKey(0)

    def make_case(key, N, C, H, W):
        kx, kw, kb, km, kv = jax.random.split(key, 5)
        x = jax.random.normal(kx, (N, C, H, W), dtype=jnp.float32)
        weight = jnp.ones((C,), jnp.float32) + 0.1 * jax.random.normal(kw, (C,))
        bias = 0.1 * jax.random.normal(kb, (C,))
        running_mean = 0.1 * jax.random.normal(km, (C,))
        running_var = jnp.ones((C,), jnp.float32) + 0.1 * jnp.abs(
            jax.random.normal(kv, (C,)))
        return x, weight, bias, running_mean, running_var

    k1, k2 = jax.random.split(key)

    # Case 1: aligned shapes (NC=8, HW=256).
    args1 = make_case(k1, 2, 4, 16, 16)
    out1 = jax.block_until_ready(frozen_batch_norm_2d(*args1))
    ref1 = _reference(*args1)
    assert out1.shape == args1[0].shape
    assert jnp.allclose(out1, ref1, atol=1e-5, rtol=1e-5)

    # Case 2: ragged shapes (NC=9, HW=196) exercising edge-masked blocks
    # (no wrapper-side pad/slice anymore).
    args2 = make_case(k2, 3, 3, 14, 14)
    out2 = jax.block_until_ready(frozen_batch_norm_2d(*args2))
    ref2 = _reference(*args2)
    assert out2.shape == args2[0].shape
    assert jnp.allclose(out2, ref2, atol=1e-5, rtol=1e-5)

    print("KERNEL_OK")
</pallas_src>

<mosaic_0001>
module attributes {stable_mosaic.version = 11 : i64} {
  func.func @_frozen_bn_kernel(%arg0: i32, %arg1: i32, %arg2: memref<8x256xf32, #tpu.memory_space<vmem>>, %arg3: memref<8x2xf32, #tpu.memory_space<vmem>>, %arg4: memref<8x256xf32, #tpu.memory_space<vmem>>) attributes {dimension_semantics = [#tpu.dimension_semantics<parallel>, #tpu.dimension_semantics<parallel>], iteration_bounds = array<i64: 1, 1>, scalar_prefetch = 0 : i64, scratch_operands = 0 : i64, tpu.core_type = #tpu.core_type<tc>, window_params = [{transform_indices = @transform_0, window_bounds = array<i64: 8, 256>}, {transform_indices = @transform_1, window_bounds = array<i64: 8, 2>}, {transform_indices = @transform_2, window_bounds = array<i64: 8, 256>}]} {
    %c0 = arith.constant 0 : index
    %c0_0 = arith.constant 0 : index
    %0 = vector.load %arg2[%c0, %c0_0] : memref<8x256xf32, #tpu.memory_space<vmem>>, vector<8x256xf32>
    %c0_1 = arith.constant 0 : index
    %c0_2 = arith.constant 0 : index
    %1 = vector.load %arg3[%c0_1, %c0_2] : memref<8x2xf32, #tpu.memory_space<vmem>>, vector<8x2xf32>
    %2 = vector.extract_strided_slice %1 {offsets = [0, 0], sizes = [8, 1], strides = [1, 1]} : vector<8x2xf32> to vector<8x1xf32>
    %3 = vector.broadcast %2 : vector<8x1xf32> to vector<8x256xf32>
    %4 = arith.mulf %0, %3 : vector<8x256xf32>
    %5 = vector.extract_strided_slice %1 {offsets = [0, 1], sizes = [8, 1], strides = [1, 1]} : vector<8x2xf32> to vector<8x1xf32>
    %6 = vector.broadcast %5 : vector<8x1xf32> to vector<8x256xf32>
    %7 = arith.addf %4, %6 : vector<8x256xf32>
    %c0_3 = arith.constant 0 : index
    %c0_4 = arith.constant 0 : index
    %8 = vector.load %arg4[%c0_3, %c0_4] : memref<8x256xf32, #tpu.memory_space<vmem>>, vector<8x256xf32>
    tpu.vector_store %arg4[%c0_3, %c0_4], %7 {strides = array<i32>} : memref<8x256xf32, #tpu.memory_space<vmem>>, vector<8x256xf32>,
    return
  }
  func.func @transform_0(%arg0: i32, %arg1: i32) -> (i32, i32) {
    %c0_i32 = arith.constant 0 : i32
    return %arg0, %arg1 : i32, i32
  }
  func.func @transform_1(%arg0: i32, %arg1: i32) -> (i32, i32) {
    %c0_i32 = arith.constant 0 : i32
    %c0_i32_0 = arith.constant 0 : i32
    return %arg0, %c0_i32 : i32, i32
  }
  func.func @transform_2(%arg0: i32, %arg1: i32) -> (i32, i32) {
    %c0_i32 = arith.constant 0 : i32
    return %arg0, %arg1 : i32, i32
  }
}

</mosaic_0001>

<llo_original>
// kernel: tpu_custom_call.1
$region0: #{tpu_custom_call.1}
  #allocation0 [shape = 'u32[]', space=smem, size = 0x4, offset = 0x4, fixed_abs, tag = 'smem constant byte address 0x4 - core index']
  #allocation1 [shape = 'u32[144,128]{1,0:T(1,128)}', space=vmem, size = 0x12000, scoped, tag = 'internal scratch']
  %s0 = inlined_call_operand.hbm [shape: f32[8,256], index: 0, kind: input, shape index: {}]
  %s1 = inlined_call_operand.vmem [shape: f32[8,2], index: 1, kind: input, shape index: {}]
  %s2 = inlined_call_operand.hbm [shape: f32[8,256], index: 2, kind: output, shape index: {}]
  %s3 = sld [smem:[#allocation0]]
  $region22: #{tpu_custom_call.1} parent=0
    _
  %s5 = ssub.s32 1, %s3
  %s6 = scalar_select 0, %s5, %s3
  $region1: #{tpu_custom_call.1} parent=0
    #allocation2 [shape = 'u8[8192]{0}', space=vmem, size = 0x2000, scoped, tag = 'input window, operand 0, single buffered']
    #allocation3 [shape = 's32[1]{0}', space=sflag, size = 0x4, scoped, tag = 'scoped memory for tpu_custom_call.1']
    #allocation4 [shape = 's32[1]{0}', space=sflag, size = 0x4, scoped, tag = 'scoped memory for tpu_custom_call.1']
    #allocation5 [shape = 'u8[8192]{0}', space=vmem, size = 0x2000, scoped, tag = 'output window, operand 0, single buffered']
    %7 = vsyncpa [#allocation3], 0
    %8 = vsyncpa [#allocation4], 0
    // Predicated region
    $region2: #{tpu_custom_call.1} parent=1 // pred_check
      _
    $region3: #{tpu_custom_call.1} parent=1 // pred_check_branch
      %10 = sbr.rel (0) target = $region5
    $region4: #{tpu_custom_call.1} parent=1 // pred_region
      %s12 = ssub.s32 256, 256
      %13 = vsyncadd [#allocation3], %s12
      %s15 = sshll.u32 [#allocation2], 4
      %s16 = int_to_ptr.vmem [resolvable:$true] %s15
      %18 = dma.hbm_to_vmem [thread:$0]  %s0, 256, %s16, [#allocation3]
    $region5: #{tpu_custom_call.1} parent=1 // pred_fallthru
      _
    // Predicated region
    $region6: #{tpu_custom_call.1} parent=1 // pred_check
      _
    $region7: #{tpu_custom_call.1} parent=1 // pred_check_branch
      %20 = sbr.rel (0) target = $region9
    $region8: #{tpu_custom_call.1} parent=1 // pred_region
      _
    $region9: #{tpu_custom_call.1} parent=1 // pred_fallthru
      _
    // Predicated region
    $region10: #{tpu_custom_call.1} parent=1 // pred_check
      _
    $region11: #{tpu_custom_call.1} parent=1 // pred_check_branch
      %22 = sbr.rel (0) target = $region13
    $region12: #{tpu_custom_call.1} parent=1 // pred_region
      %23 = dma.done [#allocation3], 256
    $region13: #{tpu_custom_call.1} parent=1 // pred_fallthru
      _
    %v24 = vld [vmem:[#allocation2] sm:$0xff]
    %v25 = vld [vmem:[#allocation2 + $0x8] sm:$0xff]
    %v26 = vld [vmem:[%s1] sm:$0xff]
    %28 = vset.pattern.permute.xlu0 0
    %29 = vperm.xlu0 %28, %v26
    %v30 = vpop.permute.xlu0 %29
    %v32 = vmul.f32 %v24, %v30
    %v33 = vmul.f32 %v25, %v30
    %34 = vset.pattern.permute.xlu0 1
    %35 = vperm.xlu0 %34, %v26
    %v36 = vpop.permute.xlu0 %35
    %v38 = vadd.f32 %v32, %v36
    %v39 = vadd.f32 %v33, %v36
    %40 = vst [vmem:[#allocation5] sm:$0xff] %v38
    %41 = vst [vmem:[#allocation5 + $0x8] sm:$0xff] %v39
    // Predicated region
    $region14: #{tpu_custom_call.1} parent=1 // pred_check
      _
    $region15: #{tpu_custom_call.1} parent=1 // pred_check_branch
      %43 = sbr.rel (0) target = $region17
    $region16: #{tpu_custom_call.1} parent=1 // pred_region
      %s45 = ssub.s32 256, 256
      %46 = vsyncadd [#allocation4], %s45
      %s48 = sshll.u32 [#allocation5], 4
      %s49 = int_to_ptr.vmem [resolvable:$true] %s48
      %51 = dma.vmem_to_hbm [thread:$0]  %s49, 256, %s2, [#allocation4]
    $region17: #{tpu_custom_call.1} parent=1 // pred_fallthru
      _
    // Predicated region
    $region18: #{tpu_custom_call.1} parent=1 // pred_check
      _
    $region19: #{tpu_custom_call.1} parent=1 // pred_check_branch
      %53 = sbr.rel (0) target = $region21
    $region20: #{tpu_custom_call.1} parent=1 // pred_region
      %54 = dma.done [#allocation4], 256
    $region21: #{tpu_custom_call.1} parent=1 // pred_fallthru
      _
    %55 = vsyncpa [#allocation3], 1
    %56 = vsyncpa [#allocation4], 1

</llo_original>
